<compile_context>
chip_gen: v7x
topology: tpu7x:2x2x1
jax: 0.10.0
libtpu: 0.0.40
codegen_flags: <defaults>
</compile_context>

<pallas_src>
import functools
import numpy as np

import jax
import jax.numpy as jnp
from jax.experimental import pallas as pl
from jax.experimental.pallas import tpu as pltpu


# ---------------------------------------------------------------------------
# Host-side (glue): PIL-BICUBIC resize matrices (deterministic, shape-only)
# ---------------------------------------------------------------------------
def _cubic(x, a=-0.5):
    x = np.abs(x)
    return np.where(
        x < 1.0,
        ((a + 2.0) * x - (a + 3.0)) * x * x + 1.0,
        np.where(x < 2.0, (((x - 5.0) * x + 8.0) * x - 4.0) * a, 0.0),
    )


def pil_bicubic_matrix(in_size, out_size):
    """(out_size, in_size) matrix reproducing PIL BICUBIC resample (mode 'F')."""
    support = 2.0
    scale = in_size / out_size
    filterscale = max(scale, 1.0)
    sup = support * filterscale
    mat = np.zeros((out_size, in_size), dtype=np.float64)
    for i in range(out_size):
        center = (i + 0.5) * scale
        xmin = max(int(center - sup + 0.5), 0)
        xmax = min(int(center + sup + 0.5), in_size)
        js = np.arange(xmin, xmax)
        w = _cubic((js + 0.5 - center) / filterscale)
        mat[i, xmin:xmax] = w / w.sum()
    return mat.astype(np.float32)


# ---------------------------------------------------------------------------
# Generation-aware tiling knobs (host-side, static)
# ---------------------------------------------------------------------------
def _hw_params():
    """Per-TPU-generation tiling / VMEM knobs, sniffed from device_kind."""
    try:
        kind = jax.devices()[0].device_kind.lower()
    except Exception:                                        # pragma: no cover
        kind = ""
    if "v7" in kind:
        # 64 MiB VMEM/TC, 2x256 MXU, 2 TensorCores share the parallel grid axes.
        return dict(k_align=256, vmem_cap=48 << 20, toh_cap=256, n_cores=2)
    if "v6" in kind:
        # 128 MiB VMEM, 2x256 MXU -> big tiles, 256-deep K.
        return dict(k_align=256, vmem_cap=96 << 20, toh_cap=512, n_cores=1)
    if "v5" in kind and ("lite" in kind or "v5e" in kind):
        # 128 MiB VMEM, 4x128 MXU -> 128-deep K but grow TK to the VMEM budget.
        return dict(k_align=128, vmem_cap=96 << 20, toh_cap=512, n_cores=1)
    # unknown / older generations: conservative limits (validated on the v2 run)
    return dict(k_align=128, vmem_cap=64 << 20, toh_cap=512, n_cores=1)


def _pick_m_tile(oh, toh_cap, prefer_splits=1):
    """Output row tile: multiple of 32 dividing OH (safe for u8/bf16/f32 tiling).

    On multi-TensorCore chips prefer a tile that yields >= prefer_splits m-tiles so
    the 'parallel' axis can be sharded across cores."""
    hi = min(oh, toh_cap)
    cands = [t for t in range(32, hi + 1, 32) if oh % t == 0]
    if not cands:
        return oh                        # no clean divisor: fall back to full rows
    if prefer_splits > 1:
        split = [t for t in cands if oh // t >= prefer_splits]
        if split:
            return max(split)
    return max(cands)


def _pick_k_tile(total_k, k_align, tk_cap):
    """Largest k_align-multiple dividing total_k within the VMEM-derived cap."""
    if total_k <= 512 or total_k <= k_align:
        return total_k                   # small K: single full-extent chunk
    best = k_align
    t = k_align
    limit = min(total_k, max(k_align, tk_cap))
    while t <= limit:
        if total_k % t == 0:
            best = t
        t += k_align
    return best


def _plan_tiles(oh, h, total_k, out_cols, x_item, cd, out_item, hw,
                prefer_splits=1, k_tile=None):
    toh = _pick_m_tile(oh, hw["toh_cap"], prefer_splits)
    if k_tile is not None:
        return toh, min(k_tile, total_k)
    # fixed per-step footprint: A block + output block (double-buffered) + f32 acc
    fixed = 2 * toh * h * cd + 2 * toh * out_cols * out_item + toh * out_cols * 4
    avail = hw["vmem_cap"] * 3 // 4 - fixed
    # per unit of K: image column + Bt row (double-buffered) + f32/bf16 tmp row
    per_k = 2 * (h * x_item + out_cols * cd) + toh * (4 + cd)
    tk_cap = max(hw["k_align"], avail // max(1, per_k))
    return toh, _pick_k_tile(total_k, hw["k_align"], tk_cap)


def _vmem_limit(toh, h, tk, out_cols, x_item, cd, out_item, multi_k, cap):
    """Scoped-VMEM request sized to the real block footprint (incl. the f32 tmp)."""
    est = (2 * toh * h * cd            # A blocks (double-buffered)
           + 2 * h * tk * x_item       # image chunk blocks
           + h * tk * cd               # in-kernel cast copy of the image chunk
           + 2 * tk * out_cols * cd    # Bt chunk blocks
           + 2 * toh * out_cols * out_item   # output blocks
           + toh * tk * (4 + cd))      # f32 tmp + its bf16 copy
    if multi_k:
        est += toh * out_cols * 4      # f32 accumulator scratch
    return int(min(cap, max(32 << 20, 2 * est)))


def _pad_contraction(k, x, bt_np, k_align, k_tile):
    """Zero-pad the contraction dim (last axis of x, first axis of bt_np)."""
    if k_tile is not None:
        assert k_tile % 128 == 0, "k_tile override must be a multiple of 128"
        target = -(-k // k_tile) * k_tile
    elif k <= 512:
        target = k                     # small K stays a single full-extent chunk
    else:
        target = -(-k // k_align) * k_align
    if target != k:
        x = jnp.pad(x, [(0, 0)] * (x.ndim - 1) + [(0, target - k)])
        bt_np = np.pad(bt_np, ((0, target - k), (0, 0)))
    return target, x, bt_np


# ---------------------------------------------------------------------------
# Pallas kernel: (A_pad @ x_chunk) @ Bt_chunk -> accumulate / clip / round / store
# ---------------------------------------------------------------------------
def _resize_pad_kernel(a_ref, x_ref, bt_ref, o_ref, acc_ref=None, *,
                       k_axis, float_output, multi_k):
    """One grid step of  out = clip(A_pad @ X @ Bt_pad)  (+ rint/uint8).

    a_ref : (TOH, H)    padded height-resize rows (compute dtype)
    x_ref : (H, TK)     image contraction chunk (input dtype, cast in VMEM)
    bt_ref: (TK, OWc)   padded width-resize chunk (compute dtype)
    o_ref : (TOH, OWc)  output block;  acc_ref: f32 accumulator (only if multi_k)
    """
    x = x_ref[...].astype(a_ref.dtype)                 # in-VMEM cast (bf16 on u8 path)
    tmp = jnp.dot(a_ref[...], x, preferred_element_type=jnp.float32)      # (TOH, TK)
    part = jnp.dot(tmp.astype(bt_ref.dtype), bt_ref[...],
                   preferred_element_type=jnp.float32)                    # (TOH, OWc)

    def _finalize(res):
        res = jnp.clip(res, 0.0, 255.0)                # resize_single_channel .clip
        if float_output:
            o_ref[...] = res.astype(o_ref.dtype)       # single lane-dense store
        else:                                          # np.uint8(np.rint(...))
            o_ref[...] = jnp.round(res).astype(jnp.int32).astype(jnp.uint8)

    if not multi_k:
        _finalize(part)                                # fast path: no accumulator RMW
        return

    k = pl.program_id(k_axis)

    @pl.when(k == 0)
    def _():
        acc_ref[...] = part                            # init-by-write (no zero fill)

    @pl.when(k > 0)
    def _():
        acc_ref[...] += part

    @pl.when(k == pl.num_programs(k_axis) - 1)
    def _():
        _finalize(acc_ref[...])


def _launch(a, x, bt, *, out_shape, grid, in_specs, out_spec, acc_shape, dim_sem,
            k_axis, float_output, multi_k, vmem_limit):
    kernel = functools.partial(_resize_pad_kernel, k_axis=k_axis,
                               float_output=float_output, multi_k=multi_k)
    scratch = [pltpu.VMEM(acc_shape, jnp.float32)] if multi_k else []
    return pl.pallas_call(
        kernel,
        out_shape=out_shape,
        grid_spec=pltpu.PrefetchScalarGridSpec(
            num_scalar_prefetch=0,
            grid=grid,
            in_specs=in_specs,
            out_specs=out_spec,
            scratch_shapes=scratch),
        compiler_params=pltpu.CompilerParams(
            dimension_semantics=dim_sem,
            vmem_limit_bytes=vmem_limit),
    )(a, x, bt)


# ---------------------------------------------------------------------------
# Wrapper
# ---------------------------------------------------------------------------
def resize_with_pad(image_hwc, new_shape, float_output=False, *,
                    use_kron=None, k_tile=None):
    """JAX/Pallas equivalent of ResizeWithPad.forward.

    image_hwc : (H, W, C) array (any real dtype), values in [0, 255]
    new_shape : (new_W, new_H) -- same convention as the PyTorch module
    use_kron  : None = auto; True forces the kron layout, False the channel-grid one
    k_tile    : testing override for the contraction tile (multiple of 128)
    returns   : (new_H, new_W, C) uint8 (float32 if float_output)
    """
    image_hwc = jnp.asarray(image_hwc)
    H, W, C = image_hwc.shape
    new_w, new_h = int(new_shape[0]), int(new_shape[1])

    ratio_w = float(new_w) / W
    ratio_h = float(new_h) / H
    ratio = min(ratio_w, ratio_h)

    # ---- pad-only branch (both ratios > 1): pure data movement -> plain XLA pad --
    if ratio_w > 1 and ratio_h > 1:
        delta_w, delta_h = new_w - W, new_h - H
        top, left = delta_h // 2, delta_w // 2
        res = jnp.pad(image_hwc.astype(jnp.float32),
                      ((top, delta_h - top), (left, delta_w - left), (0, 0)))
        if float_output:
            return res
        return jnp.clip(jnp.round(res), 0.0, 255.0).astype(jnp.uint8)

    # ---- resize branch ------------------------------------------------------------
    rw = int(round(W * ratio))
    rh = int(round(H * ratio))
    A = pil_bicubic_matrix(H, rh)                       # height resize
    B = pil_bicubic_matrix(W, rw)                       # width  resize

    delta_w, delta_h = new_w - rw, new_h - rh
    top, left = delta_h // 2, delta_w // 2
    OH, OW = new_h, new_w

    # Bake the centered zero padding into the resize matrices.
    A_pad = np.zeros((OH, H), dtype=np.float32)
    A_pad[top:top + rh, :] = A
    Bt_pad = np.zeros((W, OW), dtype=np.float32)
    Bt_pad[:, left:left + rw] = B.T

    hw = _hw_params()
    compute_dtype = jnp.float32 if float_output else jnp.bfloat16   # bf16: MXU-native
    out_dtype = jnp.float32 if float_output else jnp.uint8
    cd = jnp.dtype(compute_dtype).itemsize
    x_item = jnp.dtype(image_hwc.dtype).itemsize
    out_item = jnp.dtype(out_dtype).itemsize

    if use_kron is None:
        # kron(Bt_pad, I_C) inflates the column matrix by C^2 bytes; only worth it
        # (saves the two wrapper transposes) while that matrix stays tiny.
        use_kron = (C == 1) or (W * C * OW * C * cd <= (4 << 20))

    a = jnp.asarray(A_pad, dtype=compute_dtype)

    if use_kron:
        # ---- kron layout: (H, W*C) view in, (OH, OW*C) out, no transposes --------
        KW, OWC = W * C, OW * C
        x2 = image_hwc.reshape(H, KW)                             # free reshape
        btk_np = np.kron(Bt_pad, np.eye(C, dtype=np.float32))     # (W*C, OW*C)
        total_k, x2, btk_np = _pad_contraction(KW, x2, btk_np, hw["k_align"], k_tile)
        btk = jnp.asarray(btk_np, dtype=compute_dtype)

        TOH, TK = _plan_tiles(OH, H, total_k, OWC, x_item, cd, out_item, hw,
                              prefer_splits=hw["n_cores"], k_tile=k_tile)
        num_m, num_k = OH // TOH, total_k // TK
        multi_k = num_k > 1
        vmem_limit = _vmem_limit(TOH, H, TK, OWC, x_item, cd, out_item, multi_k,
                                 hw["vmem_cap"])

        out2d = _launch(
            a, x2, btk,
            out_shape=jax.ShapeDtypeStruct((OH, OWC), out_dtype),
            grid=(num_m, num_k),
            in_specs=[
                pl.BlockSpec((TOH, H), lambda m, k: (m, 0)),     # padded row resize
                pl.BlockSpec((H, TK), lambda m, k: (0, k)),      # image K-chunk
                pl.BlockSpec((TK, OWC), lambda m, k: (k, 0)),    # padded col resize
            ],
            out_spec=pl.BlockSpec((TOH, OWC), lambda m, k: (m, 0)),
            acc_shape=(TOH, OWC),
            dim_sem=("parallel", "arbitrary"),
            k_axis=1, float_output=float_output, multi_k=multi_k,
            vmem_limit=vmem_limit)
        return out2d.reshape(OH, OW, C)                          # free reshape -> HWC

    # ---- channel-grid layout: one HWC->CHW transpose, plain (W, OW) width matrix --
    x_chw = jnp.transpose(image_hwc, (2, 0, 1))                  # (C, H, W)
    total_k, x_chw, bt_np = _pad_contraction(W, x_chw, Bt_pad, hw["k_align"], k_tile)
    bt = jnp.asarray(bt_np, dtype=compute_dtype)

    TOH, TK = _plan_tiles(OH, H, total_k, OW, x_item, cd, out_item, hw,
                          prefer_splits=(hw["n_cores"] if C == 1 else 1),
                          k_tile=k_tile)
    num_m, num_k = OH // TOH, total_k // TK
    multi_k = num_k > 1
    vmem_limit = _vmem_limit(TOH, H, TK, OW, x_item, cd, out_item, multi_k,
                             hw["vmem_cap"])

    out_cohw = _launch(
        a, x_chw, bt,
        out_shape=jax.ShapeDtypeStruct((C, OH, OW), out_dtype),
        grid=(C, num_m, num_k),
        in_specs=[
            pl.BlockSpec((TOH, H), lambda c, m, k: (m, 0)),
            pl.BlockSpec((None, H, TK), lambda c, m, k: (c, 0, k)),
            pl.BlockSpec((TK, OW), lambda c, m, k: (k, 0)),
        ],
        out_spec=pl.BlockSpec((None, TOH, OW), lambda c, m, k: (c, m, 0)),
        acc_shape=(TOH, OW),
        dim_sem=("parallel", "parallel", "arbitrary"),
        k_axis=2, float_output=float_output, multi_k=multi_k,
        vmem_limit=vmem_limit)
    return jnp.transpose(out_cohw, (1, 2, 0))                    # (OH, OW, C)


# ---------------------------------------------------------------------------
# Pure-numpy reference (same math, float32) for sanity checks
# ---------------------------------------------------------------------------
def _numpy_ref(image_hwc, new_shape, float_output=False):
    img = np.asarray(image_hwc, np.float32)
    H, W, C = img.shape
    new_w, new_h = new_shape
    ratio = min(float(new_w) / W, float(new_h) / H)
    if float(new_w) / W > 1 and float(new_h) / H > 1:
        res = img
        delta_w, delta_h = new_w - W, new_h - H
    else:
        rw, rh = round(W * ratio), round(H * ratio)
        A = pil_bicubic_matrix(H, rh)
        B = pil_bicubic_matrix(W, rw)
        res = np.stack(
            [np.clip(A @ img[:, :, c] @ B.T, 0.0, 255.0) for c in range(C)], axis=-1
        ).astype(np.float32)
        delta_w, delta_h = new_w - rw, new_h - rh
    top, bottom = delta_h // 2, delta_h - delta_h // 2
    left, right = delta_w // 2, delta_w - delta_w // 2
    out = np.pad(res, ((top, bottom), (left, right), (0, 0)), mode="constant")
    if not float_output:
        out = np.uint8(np.rint(out.clip(0.0, 255.0)))
    return out


if __name__ == "__main__":
    key = jax.random.PRNGKey(0)
    H, W, C = 16, 16, 3
    new_shape = (12, 10)  # (new_W, new_H)

    image = jax.random.uniform(key, (H, W, C), jnp.float32) * 255.0

    # 1) float path, auto (kron) layout -- f32 end-to-end, checkable vs numpy ref
    out_f = jax.block_until_ready(resize_with_pad(image, new_shape, float_output=True))
    ref_f = _numpy_ref(np.asarray(image), new_shape, float_output=True)
    assert out_f.shape == ref_f.shape == (new_shape[1], new_shape[0], C)
    np.testing.assert_allclose(np.asarray(out_f), ref_f, atol=1e-2, rtol=1e-4)

    # 2) uint8 path (module default): bf16 compute with f32 accumulation, uint8
    #    emitted directly from the kernel -> allow +/-2 LSB vs the f32 reference.
    out_u8 = jax.block_until_ready(resize_with_pad(image, new_shape, float_output=False))
    ref_u8 = _numpy_ref(np.asarray(image), new_shape, float_output=False)
    assert out_u8.dtype == jnp.uint8 and out_u8.shape == ref_u8.shape
    assert np.max(np.abs(np.asarray(out_u8).astype(np.int32) -
                         ref_u8.astype(np.int32))) <= 2

    # 3) channel-grid (no-kron) layout, forced -- the large-image path
    out_nk = jax.block_until_ready(
        resize_with_pad(image, new_shape, float_output=True, use_kron=False))
    np.testing.assert_allclose(np.asarray(out_nk), ref_f, atol=1e-2, rtol=1e-4)
    out_nk8 = jax.block_until_ready(
        resize_with_pad(image, new_shape, float_output=False, use_kron=False))
    assert np.max(np.abs(np.asarray(out_nk8).astype(np.int32) -
                         ref_u8.astype(np.int32))) <= 2

    # 4) multi-K accumulator path, forced via the k_tile override (num_k = 3)
    H2, W2 = 16, 128
    image2 = jax.random.uniform(jax.random.PRNGKey(1), (H2, W2, C), jnp.float32) * 255.0
    ns2 = (96, 24)  # (new_W, new_H)
    out_mk = jax.block_until_ready(
        resize_with_pad(image2, ns2, float_output=True, k_tile=128))
    ref_mk = _numpy_ref(np.asarray(image2), ns2, float_output=True)
    assert out_mk.shape == ref_mk.shape == (24, 96, C)
    np.testing.assert_allclose(np.asarray(out_mk), ref_mk, atol=1e-2, rtol=1e-4)

    # 5) pad-only branch (both ratios > 1): bandwidth-only jnp.pad, no matmuls
    out_pad = jax.block_until_ready(resize_with_pad(image, (24, 20), float_output=True))
    ref_pad = _numpy_ref(np.asarray(image), (24, 20), float_output=True)
    assert out_pad.shape == ref_pad.shape == (20, 24, C)
    np.testing.assert_allclose(np.asarray(out_pad), ref_pad, atol=1e-2, rtol=1e-4)

    print("KERNEL_OK")
</pallas_src>

<mosaic_0001>
module attributes {stable_mosaic.version = 11 : i64} {
  func.func @_resize_pad_kernel(%arg0: i32, %arg1: i32, %arg2: memref<10x16xf32, #tpu.memory_space<vmem>>, %arg3: memref<16x48xf32, #tpu.memory_space<vmem>>, %arg4: memref<48x36xf32, #tpu.memory_space<vmem>>, %arg5: memref<10x36xf32, #tpu.memory_space<vmem>>) attributes {dimension_semantics = [#tpu.dimension_semantics<parallel>, #tpu.dimension_semantics<arbitrary>], iteration_bounds = array<i64: 1, 1>, scalar_prefetch = 0 : i64, scratch_operands = 0 : i64, tpu.core_type = #tpu.core_type<tc>, window_params = [{transform_indices = @transform_0, window_bounds = array<i64: 10, 16>}, {transform_indices = @transform_1, window_bounds = array<i64: 16, 48>}, {transform_indices = @transform_2, window_bounds = array<i64: 48, 36>}, {transform_indices = @transform_3, window_bounds = array<i64: 10, 36>}]} {
    %c0 = arith.constant 0 : index
    %c0_0 = arith.constant 0 : index
    %0 = vector.load %arg3[%c0, %c0_0] : memref<16x48xf32, #tpu.memory_space<vmem>>, vector<16x48xf32>
    %c0_1 = arith.constant 0 : index
    %c0_2 = arith.constant 0 : index
    %1 = vector.load %arg2[%c0_1, %c0_2] : memref<10x16xf32, #tpu.memory_space<vmem>>, vector<10x16xf32>
    %cst = arith.constant dense<0.000000e+00> : vector<10x48xf32>
    %2 = tpu.matmul %1, %0, %cst {dimension_numbers = #tpu.dot_dimension_numbers<[1], [0], [0], [1], [0, 0, 1, 1], [], []>} : vector<10x16xf32>, vector<16x48xf32>, vector<10x48xf32> -> vector<10x48xf32>
    %c0_3 = arith.constant 0 : index
    %c0_4 = arith.constant 0 : index
    %3 = vector.load %arg4[%c0_3, %c0_4] : memref<48x36xf32, #tpu.memory_space<vmem>>, vector<48x36xf32>
    %cst_5 = arith.constant dense<0.000000e+00> : vector<10x36xf32>
    %4 = tpu.matmul %2, %3, %cst_5 {dimension_numbers = #tpu.dot_dimension_numbers<[1], [0], [0], [1], [0, 0, 1, 1], [], []>} : vector<10x48xf32>, vector<48x36xf32>, vector<10x36xf32> -> vector<10x36xf32>
    %cst_6 = arith.constant 0.000000e+00 : f32
    %cst_7 = arith.constant 2.550000e+02 : f32
    %5 = vector.broadcast %cst_6 : f32 to vector<10x36xf32>
    %6 = arith.maximumf %5, %4 : vector<10x36xf32>
    %7 = vector.broadcast %cst_7 : f32 to vector<10x36xf32>
    %8 = arith.minimumf %7, %6 : vector<10x36xf32>
    %c0_8 = arith.constant 0 : index
    %c0_9 = arith.constant 0 : index
    %9 = vector.load %arg5[%c0_8, %c0_9] : memref<10x36xf32, #tpu.memory_space<vmem>>, vector<10x36xf32>
    tpu.vector_store %arg5[%c0_8, %c0_9], %8 {strides = array<i32>} : memref<10x36xf32, #tpu.memory_space<vmem>>, vector<10x36xf32>,
    return
  }
  func.func @transform_0(%arg0: i32, %arg1: i32) -> (i32, i32) {
    %c0_i32 = arith.constant 0 : i32
    %c0_i32_0 = arith.constant 0 : i32
    return %arg0, %c0_i32 : i32, i32
  }
  func.func @transform_1(%arg0: i32, %arg1: i32) -> (i32, i32) {
    %c0_i32 = arith.constant 0 : i32
    %c0_i32_0 = arith.constant 0 : i32
    return %c0_i32, %arg1 : i32, i32
  }
  func.func @transform_2(%arg0: i32, %arg1: i32) -> (i32, i32) {
    %c0_i32 = arith.constant 0 : i32
    %c0_i32_0 = arith.constant 0 : i32
    return %arg1, %c0_i32 : i32, i32
  }
  func.func @transform_3(%arg0: i32, %arg1: i32) -> (i32, i32) {
    %c0_i32 = arith.constant 0 : i32
    %c0_i32_0 = arith.constant 0 : i32
    return %arg0, %c0_i32 : i32, i32
  }
}

</mosaic_0001>

<llo_original>
// kernel: tpu_custom_call.1
$region0: #{tpu_custom_call.1}
  #allocation0 [shape = 'u32[]', space=smem, size = 0x4, offset = 0x4, fixed_abs, tag = 'smem constant byte address 0x4 - core index']
  #allocation1 [shape = 'u32[144,128]{1,0:T(1,128)}', space=vmem, size = 0x12000, scoped, tag = 'internal scratch']
  %s0 = inlined_call_operand.vmem [shape: f32[10,16], index: 0, kind: input, shape index: {}]
  %s1 = inlined_call_operand.vmem [shape: f32[16,48], index: 1, kind: input, shape index: {}]
  %s2 = inlined_call_operand.vmem [shape: f32[48,36], index: 2, kind: input, shape index: {}]
  %s3 = inlined_call_operand.hbm [shape: f32[10,36], index: 3, kind: output, shape index: {}]
  %s4 = sld [smem:[#allocation0]]
  $region22: #{tpu_custom_call.1} parent=0
    _
  %s6 = ssub.s32 1, %s4
  %s7 = scalar_select 0, %s6, %s4
  $region1: #{tpu_custom_call.1} parent=0
    #allocation2 [shape = 'u8[8192]{0}', space=vmem, size = 0x2000, scoped, tag = 'output window, operand 0, single buffered']
    #allocation3 [shape = 's32[1]{0}', space=sflag, size = 0x4, scoped, tag = 'scoped memory for tpu_custom_call.1']
    %8 = vsyncpa [#allocation3], 0
    // Predicated region
    $region2: #{tpu_custom_call.1} parent=1 // pred_check
      _
    $region3: #{tpu_custom_call.1} parent=1 // pred_check_branch
      %10 = sbr.rel (0) target = $region5
    $region4: #{tpu_custom_call.1} parent=1 // pred_region
      _
    $region5: #{tpu_custom_call.1} parent=1 // pred_fallthru
      _
    // Predicated region
    $region6: #{tpu_custom_call.1} parent=1 // pred_check
      _
    $region7: #{tpu_custom_call.1} parent=1 // pred_check_branch
      %12 = sbr.rel (0) target = $region9
    $region8: #{tpu_custom_call.1} parent=1 // pred_region
      _
    $region9: #{tpu_custom_call.1} parent=1 // pred_fallthru
      _
    // Predicated region
    $region10: #{tpu_custom_call.1} parent=1 // pred_check
      _
    $region11: #{tpu_custom_call.1} parent=1 // pred_check_branch
      %14 = sbr.rel (0) target = $region13
    $region12: #{tpu_custom_call.1} parent=1 // pred_region
      _
    $region13: #{tpu_custom_call.1} parent=1 // pred_fallthru
      _
    %v15 = vld [vmem:[%s1] sm:$0xff]
    %v16 = vld [vmem:[%s1 + $0x8] sm:$0xff]
    %v17 = vld [vmem:[%s0] sm:$0xff]
    %v18 = vld [vmem:[%s0 + $0x8] sm:$0x3]
    %vm19 = vcmask 130048
    %v21 = vsel %vm19, %v17, 0
    %v24 = vsel %vm19, %v18, 0
    %26 = vmatprep.subr.mxu0 0.0
    %27 = vmatpush1.msra.mxu0 %v15
    %28 = vmatprep.subr.mxu0 0.0
    %29 = vmatpush1.msra.mxu0 %v16
    %30 = vmatprep.subr.mxu0 0.0
    %31 = vmatpush1.msra.mxu0 0.0
    %32 = vmatprep.subr.mxu0 0.0
    %33 = vmatpush1.msra.mxu0 0.0
    %34 = vmatprep.subr.mxu0 0.0
    %35 = vmatpush1.msra.mxu0 0.0
    %36 = vmatprep.subr.mxu0 0.0
    %37 = vmatpush1.msra.mxu0 0.0
    %38 = vmatprep.subr.mxu0 0.0
    %39 = vmatpush1.msra.mxu0 0.0
    %40 = vmatprep.subr.mxu0 0.0
    %41 = vmatpush1.msra.mxu0 0.0
    %42 = vmatprep.subr.mxu0 0.0
    %43 = vmatpush1.msra.mxu0 0.0
    %44 = vmatprep.subr.mxu0 0.0
    %45 = vmatpush1.msra.mxu0 0.0
    %46 = vmatprep.subr.mxu0 0.0
    %47 = vmatpush1.msra.mxu0 0.0
    %48 = vmatprep.subr.mxu0 0.0
    %49 = vmatpush1.msra.mxu0 0.0
    %50 = vmatprep.subr.mxu0 0.0
    %51 = vmatpush1.msra.mxu0 0.0
    %52 = vmatprep.subr.mxu0 0.0
    %53 = vmatpush1.msra.mxu0 0.0
    %54 = vmatprep.subr.mxu0 0.0
    %55 = vmatpush1.msra.mxu0 0.0
    %56 = vmatprep.subr.mxu0 0.0
    %57 = vmatpush1.msra.mxu0 0.0
    %58 = vmatprep.subr.mxu0 0.0
    %59 = vmatpush1.msra.mxu0 0.0
    %60 = vmatprep.subr.mxu0 0.0
    %61 = vmatpush1.msra.mxu0 0.0
    %62 = vmatprep.subr.mxu0 0.0
    %63 = vmatpush1.msra.mxu0 0.0
    %64 = vmatprep.subr.mxu0 0.0
    %65 = vmatpush1.msra.mxu0 0.0
    %66 = vmatprep.subr.mxu0 0.0
    %67 = vmatpush1.msra.mxu0 0.0
    %68 = vmatprep.subr.mxu0 0.0
    %69 = vmatpush1.msra.mxu0 0.0
    %70 = vmatprep.subr.mxu0 0.0
    %71 = vmatpush1.msra.mxu0 0.0
    %72 = vmatprep.subr.mxu0 0.0
    %73 = vmatpush1.msra.mxu0 0.0
    %74 = vmatprep.subr.mxu0 0.0
    %75 = vmatpush1.msra.mxu0 0.0
    %76 = vmatprep.subr.mxu0 0.0
    %77 = vmatpush1.msra.mxu0 0.0
    %78 = vmatprep.subr.mxu0 0.0
    %79 = vmatpush1.msra.mxu0 0.0
    %80 = vmatprep.subr.mxu0 0.0
    %81 = vmatpush1.msra.mxu0 0.0
    %82 = vmatprep.subr.mxu0 0.0
    %83 = vmatpush1.msra.mxu0 0.0
    %84 = vmatprep.subr.mxu0 0.0
    %85 = vmatpush1.msra.mxu0 0.0
    %86 = vmatprep.subr.mxu0 0.0
    %87 = vmatpush1.msra.mxu0 0.0
    %88 = vmatprep.subr.mxu0 0.0
    %89 = vmatpush1.msra.mxu0 0.0
    %90 = vmatprep.mubr.f32.mxu0 0.0
    %91 = vmatmul.mubr.f32.gmra.mrb[0].mxu0 %v21
    %v92 = vpop.f32.mrb[0].mxu0
    %v93 = vadd.f32 0.0, %v92
    %v94 = vpop.f32.mrb[0].mxu0
    %95 = vmatprep.mubr.f32.mxu0 0.0
    %96 = vmatmul.mubr.f32.gmra.mrb[0].mxu0 %v24
    %v97 = vpop.f32.mrb[0].mxu0
    %v98 = vadd.f32 0.0, %v97
    %v99 = vpop.f32.mrb[0].mxu0
    %100 = vdwg.mxu0
    %v101 = vld [vmem:[%s2] sm:$0xff]
    %v102 = vld [vmem:[%s2 + $0x8] sm:$0xff]
    %v103 = vld [vmem:[%s2 + $0x10] sm:$0xff]
    %v104 = vld [vmem:[%s2 + $0x18] sm:$0xff]
    %v105 = vld [vmem:[%s2 + $0x20] sm:$0xff]
    %v106 = vld [vmem:[%s2 + $0x28] sm:$0xff]
    %vm107 = vcmask 392192
    %v109 = vsel %vm107, %v93, 0
    %v112 = vsel %vm107, %v98, 0
    %114 = vmatprep.subr.mxu0 0.0
    %115 = vmatpush1.msra.mxu0 %v101
    %116 = vmatprep.subr.mxu0 0.0
    %117 = vmatpush1.msra.mxu0 %v102
    %118 = vmatprep.subr.mxu0 0.0
    %119 = vmatpush1.msra.mxu0 %v103
    %120 = vmatprep.subr.mxu0 0.0
    %121 = vmatpush1.msra.mxu0 %v104
    %122 = vmatprep.subr.mxu0 0.0
    %123 = vmatpush1.msra.mxu0 %v105
    %124 = vmatprep.subr.mxu0 0.0
    %125 = vmatpush1.msra.mxu0 %v106
    %126 = vmatprep.subr.mxu0 0.0
    %127 = vmatpush1.msra.mxu0 0.0
    %128 = vmatprep.subr.mxu0 0.0
    %129 = vmatpush1.msra.mxu0 0.0
    %130 = vmatprep.subr.mxu0 0.0
    %131 = vmatpush1.msra.mxu0 0.0
    %132 = vmatprep.subr.mxu0 0.0
    %133 = vmatpush1.msra.mxu0 0.0
    %134 = vmatprep.subr.mxu0 0.0
    %135 = vmatpush1.msra.mxu0 0.0
    %136 = vmatprep.subr.mxu0 0.0
    %137 = vmatpush1.msra.mxu0 0.0
    %138 = vmatprep.subr.mxu0 0.0
    %139 = vmatpush1.msra.mxu0 0.0
    %140 = vmatprep.subr.mxu0 0.0
    %141 = vmatpush1.msra.mxu0 0.0
    %142 = vmatprep.subr.mxu0 0.0
    %143 = vmatpush1.msra.mxu0 0.0
    %144 = vmatprep.subr.mxu0 0.0
    %145 = vmatpush1.msra.mxu0 0.0
    %146 = vmatprep.subr.mxu0 0.0
    %147 = vmatpush1.msra.mxu0 0.0
    %148 = vmatprep.subr.mxu0 0.0
    %149 = vmatpush1.msra.mxu0 0.0
    %150 = vmatprep.subr.mxu0 0.0
    %151 = vmatpush1.msra.mxu0 0.0
    %152 = vmatprep.subr.mxu0 0.0
    %153 = vmatpush1.msra.mxu0 0.0
    %154 = vmatprep.subr.mxu0 0.0
    %155 = vmatpush1.msra.mxu0 0.0
    %156 = vmatprep.subr.mxu0 0.0
    %157 = vmatpush1.msra.mxu0 0.0
    %158 = vmatprep.subr.mxu0 0.0
    %159 = vmatpush1.msra.mxu0 0.0
    %160 = vmatprep.subr.mxu0 0.0
    %161 = vmatpush1.msra.mxu0 0.0
    %162 = vmatprep.subr.mxu0 0.0
    %163 = vmatpush1.msra.mxu0 0.0
    %164 = vmatprep.subr.mxu0 0.0
    %165 = vmatpush1.msra.mxu0 0.0
    %166 = vmatprep.subr.mxu0 0.0
    %167 = vmatpush1.msra.mxu0 0.0
    %168 = vmatprep.subr.mxu0 0.0
    %169 = vmatpush1.msra.mxu0 0.0
    %170 = vmatprep.subr.mxu0 0.0
    %171 = vmatpush1.msra.mxu0 0.0
    %172 = vmatprep.subr.mxu0 0.0
    %173 = vmatpush1.msra.mxu0 0.0
    %174 = vmatprep.subr.mxu0 0.0
    %175 = vmatpush1.msra.mxu0 0.0
    %176 = vmatprep.subr.mxu0 0.0
    %177 = vmatpush1.msra.mxu0 0.0
    %178 = vmatprep.mubr.f32.mxu0 0.0
    %179 = vmatmul.mubr.f32.gmra.mrb[0].mxu0 %v109
    %v180 = vpop.f32.mrb[0].mxu0
    %v181 = vadd.f32 0.0, %v180
    %v182 = vpop.f32.mrb[0].mxu0
    %183 = vmatprep.mubr.f32.mxu0 0.0
    %184 = vmatmul.mubr.f32.gmra.mrb[0].mxu0 %v112
    %v185 = vpop.f32.mrb[0].mxu0
    %v186 = vadd.f32 0.0, %v185
    %v187 = vpop.f32.mrb[0].mxu0
    %188 = vdwg.mxu0
    %v189 = vmax.f32 %v181, 0.0
    %v190 = vmax.f32 %v186, 0.0
    %v191 = vmin.f32 %v189, 255.0
    %v192 = vmin.f32 %v190, 255.0
    %vm193 = vcmask 293888
    %194 = vst.msk [vmem:[#allocation2] sm:$0xff] %vm193, %v191
    %vm195 = vcmask 287744
    %196 = vst.msk [vmem:[#allocation2 + $0x8] sm:$0x3] %vm195, %v192
    // Predicated region
    $region14: #{tpu_custom_call.1} parent=1 // pred_check
      _
    $region15: #{tpu_custom_call.1} parent=1 // pred_check_branch
      %198 = sbr.rel (0) target = $region17
    $region16: #{tpu_custom_call.1} parent=1 // pred_region
      %s200 = ssub.s32 256, 256
      %201 = vsyncadd [#allocation3], %s200
      %s202 = sshll.u32 [#allocation2], 4
      %s203 = int_to_ptr.vmem [resolvable:$true] %s202
      %208 = dma.vmem_to_hbm [thread:$0]  %s203, 256, %s3, [#allocation3], 128, 128, 8
    $region17: #{tpu_custom_call.1} parent=1 // pred_fallthru
      _
    // Predicated region
    $region18: #{tpu_custom_call.1} parent=1 // pred_check
      _
    $region19: #{tpu_custom_call.1} parent=1 // pred_check_branch
      %210 = sbr.rel (0) target = $region21
    $region20: #{tpu_custom_call.1} parent=1 // pred_region
      %211 = dma.done [#allocation3], 256
    $region21: #{tpu_custom_call.1} parent=1 // pred_fallthru
      _
    %212 = vsyncpa [#allocation3], 1

</llo_original>
